<compile_context>
chip_gen: v7x
topology: tpu7x:2x2x1
jax: 0.10.0
libtpu: 0.0.40
codegen_flags: <defaults>
</compile_context>

<pallas_src>
import jax
import jax.numpy as jnp
from jax.experimental import pallas as pl
from jax.experimental.pallas import tpu as pltpu


def _sigmoid(z):
    # Hand-rolled sigmoid: exp + reciprocal lower cleanly to the EUP.
    return 1.0 / (1.0 + jnp.exp(-z))


def lstm_subnet_kernel(x_ref, wih_ref, whh_ref, bias_ref, w1_ref, b1_ref,
                       out_ref, h_scr, c_scr):
    """One grid step = one LSTM time step for one batch tile.

    grid = (batch_tiles, T).  Axis 0 is 'parallel' (independent batch tiles),
    axis 1 is 'arbitrary' (sequential recurrence).  h_scr / c_scr carry the
    recurrent state across the time axis for the current batch tile.
    """
    t = pl.program_id(1)
    n_t = pl.num_programs(1)
    H = h_scr.shape[1]

    @pl.when(t == 0)
    def _init():
        h_scr[...] = jnp.zeros_like(h_scr)
        c_scr[...] = jnp.zeros_like(c_scr)

    x_t = x_ref[0]            # (TB, D)  current time step, current batch tile
    h = h_scr[...]
    c = c_scr[...]

    # gates = x_t @ W_ih + h @ W_hh + (b_ih + b_hh)   -> (TB, 4H), f32 accum
    gates = (jnp.dot(x_t, wih_ref[...], preferred_element_type=jnp.float32)
             + jnp.dot(h, whh_ref[...], preferred_element_type=jnp.float32)
             + bias_ref[...])

    i_g = _sigmoid(gates[:, 0 * H:1 * H])
    f_g = _sigmoid(gates[:, 1 * H:2 * H])
    g_g = jnp.tanh(gates[:, 2 * H:3 * H])
    o_g = _sigmoid(gates[:, 3 * H:4 * H])

    c_new = f_g * c + i_g * g_g
    h_new = o_g * jnp.tanh(c_new)

    h_scr[...] = h_new
    c_scr[...] = c_new

    # Last time step: dropout (inference identity) -> Linear -> ReLU
    @pl.when(t == n_t - 1)
    def _finalize():
        y = (jnp.dot(h_new, w1_ref[...], preferred_element_type=jnp.float32)
             + b1_ref[...])
        out_ref[...] = jnp.maximum(y, 0.0).astype(out_ref.dtype)


def lstm_subnet_forward(x, w_ih, w_hh, b_ih, b_hh, w1, b1, *, batch_tile=None):
    """Fused LSTMSubNet forward.

    x: (T, N, in_size) f32.  Weights stored pre-transposed:
      w_ih: (in_size, 4H), w_hh: (H, 4H), b_ih/b_hh: (4H,), w1: (H, O), b1: (O,).
    Returns (N, O) f32.
    """
    T, N, D = x.shape
    H4 = w_ih.shape[1]
    H = H4 // 4
    O = w1.shape[1]

    # Batch tile: multiple of 8 (sublanes); cap at 256 so 2x double-buffered
    # (TB x D) x[t] tiles stay well inside v7x's 64 MiB VMEM while filling
    # the MXU M dimension at larger batches.
    if batch_tile is None:
        batch_tile = 256 if N >= 256 else max(8, ((N + 7) // 8) * 8)
    n_tiles = -(-N // batch_tile)
    N_pad = n_tiles * batch_tile
    if N_pad != N:
        x = jnp.pad(x, ((0, 0), (0, N_pad - N), (0, 0)))

    bias = (b_ih + b_hh).reshape(1, H4)   # fold the two LSTM biases together
    b1_2d = b1.reshape(1, O)

    out = pl.pallas_call(
        lstm_subnet_kernel,
        out_shape=jax.ShapeDtypeStruct((N_pad, O), jnp.float32),
        grid_spec=pltpu.PrefetchScalarGridSpec(
            num_scalar_prefetch=0,
            grid=(n_tiles, T),
            in_specs=[
                # x[t] for the current batch tile (pipelined per (b, t))
                pl.BlockSpec((1, batch_tile, D), lambda b, t: (t, b, 0)),
                # weights / biases: constant block index -> VMEM-resident
                pl.BlockSpec((D, H4), lambda b, t: (0, 0)),
                pl.BlockSpec((H, H4), lambda b, t: (0, 0)),
                pl.BlockSpec((1, H4), lambda b, t: (0, 0)),
                pl.BlockSpec((H, O), lambda b, t: (0, 0)),
                pl.BlockSpec((1, O), lambda b, t: (0, 0)),
            ],
            # Output block depends only on the batch tile: resident across the
            # (arbitrary) time axis, written once at t = T-1.
            out_specs=pl.BlockSpec((batch_tile, O), lambda b, t: (b, 0)),
            scratch_shapes=[
                pltpu.VMEM((batch_tile, H), jnp.float32),   # h state
                pltpu.VMEM((batch_tile, H), jnp.float32),   # c state
            ],
        ),
        compiler_params=pltpu.CompilerParams(
            dimension_semantics=("parallel", "arbitrary")),
    )(x, w_ih, w_hh, bias, w1, b1_2d)

    return out[:N]


def init_params(key, in_size, hidden, out_size):
    """Uniform(+-1/sqrt(hidden)) init mimicking nn.LSTMCell / nn.Linear defaults."""
    ks = jax.random.split(key, 6)
    k = 1.0 / (hidden ** 0.5)
    w_ih = jax.random.uniform(ks[0], (in_size, 4 * hidden), jnp.float32, -k, k)
    w_hh = jax.random.uniform(ks[1], (hidden, 4 * hidden), jnp.float32, -k, k)
    b_ih = jax.random.uniform(ks[2], (4 * hidden,), jnp.float32, -k, k)
    b_hh = jax.random.uniform(ks[3], (4 * hidden,), jnp.float32, -k, k)
    w1 = jax.random.uniform(ks[4], (hidden, out_size), jnp.float32, -k, k)
    b1 = jax.random.uniform(ks[5], (out_size,), jnp.float32, -k, k)
    return w_ih, w_hh, b_ih, b_hh, w1, b1


def reference_forward(x, w_ih, w_hh, b_ih, b_hh, w1, b1):
    """Pure-JAX reference (PyTorch LSTMCell semantics, dropout = identity)."""
    T, N, D = x.shape
    H = w_hh.shape[0]
    h = jnp.zeros((N, H), jnp.float32)
    c = jnp.zeros((N, H), jnp.float32)
    for t in range(T):
        gates = x[t] @ w_ih + h @ w_hh + b_ih + b_hh
        i_g = _sigmoid(gates[:, 0 * H:1 * H])
        f_g = _sigmoid(gates[:, 1 * H:2 * H])
        g_g = jnp.tanh(gates[:, 2 * H:3 * H])
        o_g = _sigmoid(gates[:, 3 * H:4 * H])
        c = f_g * c + i_g * g_g
        h = o_g * jnp.tanh(c)
    return jnp.maximum(h @ w1 + b1, 0.0)


if __name__ == "__main__":
    key = jax.random.PRNGKey(0)
    kx, kp = jax.random.split(key)

    seq, batch, in_size, hidden, out_size = 8, 4, 16, 32, 16
    x = jax.random.normal(kx, (seq, batch, in_size), dtype=jnp.float32)
    w_ih, w_hh, b_ih, b_hh, w1, b1 = init_params(kp, in_size, hidden, out_size)

    # TODO(synk): training-mode dropout (p) omitted; inference (identity)
    # semantics used. A training path would use pltpu.prng_seed +
    # pltpu.stateful_bernoulli masking on the last hidden state.
    out = lstm_subnet_forward(x, w_ih, w_hh, b_ih, b_hh, w1, b1)
    out = jax.block_until_ready(out)

    ref = reference_forward(x, w_ih, w_hh, b_ih, b_hh, w1, b1)
    assert out.shape == (batch, out_size)
    assert jnp.allclose(out, ref, atol=1e-4, rtol=1e-4), \
        float(jnp.max(jnp.abs(out - ref)))

    print("KERNEL_OK")
</pallas_src>

<mosaic_0001>
module attributes {stable_mosaic.version = 11 : i64} {
  func.func @lstm_subnet_kernel(%arg0: i32, %arg1: i32, %arg2: memref<1x8x16xf32, #tpu.memory_space<vmem>>, %arg3: memref<16x128xf32, #tpu.memory_space<vmem>>, %arg4: memref<32x128xf32, #tpu.memory_space<vmem>>, %arg5: memref<1x128xf32, #tpu.memory_space<vmem>>, %arg6: memref<32x16xf32, #tpu.memory_space<vmem>>, %arg7: memref<1x16xf32, #tpu.memory_space<vmem>>, %arg8: memref<8x16xf32, #tpu.memory_space<vmem>>, %arg9: memref<8x32xf32, #tpu.memory_space<vmem>>, %arg10: memref<8x32xf32, #tpu.memory_space<vmem>>) attributes {dimension_semantics = [#tpu.dimension_semantics<parallel>, #tpu.dimension_semantics<arbitrary>], iteration_bounds = array<i64: 1, 8>, scalar_prefetch = 0 : i64, scratch_operands = 2 : i64, tpu.core_type = #tpu.core_type<tc>, window_params = [{transform_indices = @transform_0, window_bounds = array<i64: 1, 8, 16>}, {pipeline_mode = #tpu.pipeline_mode<synchronous>, transform_indices = @transform_1, window_bounds = array<i64: 16, 128>}, {pipeline_mode = #tpu.pipeline_mode<synchronous>, transform_indices = @transform_2, window_bounds = array<i64: 32, 128>}, {pipeline_mode = #tpu.pipeline_mode<synchronous>, transform_indices = @transform_3, window_bounds = array<i64: 1, 128>}, {pipeline_mode = #tpu.pipeline_mode<synchronous>, transform_indices = @transform_4, window_bounds = array<i64: 32, 16>}, {pipeline_mode = #tpu.pipeline_mode<synchronous>, transform_indices = @transform_5, window_bounds = array<i64: 1, 16>}, {transform_indices = @transform_6, window_bounds = array<i64: 8, 16>}]} {
    %c0_i32 = arith.constant 0 : i32
    %0 = arith.cmpi eq, %arg1, %c0_i32 : i32
    %1 = arith.extui %0 : i1 to i32
    %c0_i32_0 = arith.constant 0 : i32
    %2 = arith.cmpi ne, %1, %c0_i32_0 : i32
    scf.if %2 {
      %cst_28 = arith.constant 0.000000e+00 : f32
      %51 = vector.broadcast %cst_28 : f32 to vector<8x32xf32>
      %c0_29 = arith.constant 0 : index
      %c0_30 = arith.constant 0 : index
      %52 = vector.load %arg9[%c0_29, %c0_30] : memref<8x32xf32, #tpu.memory_space<vmem>>, vector<8x32xf32>
      tpu.vector_store %arg9[%c0_29, %c0_30], %51 {strides = array<i32>} : memref<8x32xf32, #tpu.memory_space<vmem>>, vector<8x32xf32>,
      %cst_31 = arith.constant 0.000000e+00 : f32
      %53 = vector.broadcast %cst_31 : f32 to vector<8x32xf32>
      %c0_32 = arith.constant 0 : index
      %c0_33 = arith.constant 0 : index
      %54 = vector.load %arg10[%c0_32, %c0_33] : memref<8x32xf32, #tpu.memory_space<vmem>>, vector<8x32xf32>
      tpu.vector_store %arg10[%c0_32, %c0_33], %53 {strides = array<i32>} : memref<8x32xf32, #tpu.memory_space<vmem>>, vector<8x32xf32>,
    } else {
    }
    %c0 = arith.constant 0 : index
    %c0_1 = arith.constant 0 : index
    %c0_2 = arith.constant 0 : index
    %3 = vector.load %arg2[%c0, %c0_1, %c0_2] : memref<1x8x16xf32, #tpu.memory_space<vmem>>, vector<1x8x16xf32>
    %4 = vector.shape_cast %3 : vector<1x8x16xf32> to vector<8x16xf32>
    %c0_3 = arith.constant 0 : index
    %c0_4 = arith.constant 0 : index
    %5 = vector.load %arg9[%c0_3, %c0_4] : memref<8x32xf32, #tpu.memory_space<vmem>>, vector<8x32xf32>
    %c0_5 = arith.constant 0 : index
    %c0_6 = arith.constant 0 : index
    %6 = vector.load %arg10[%c0_5, %c0_6] : memref<8x32xf32, #tpu.memory_space<vmem>>, vector<8x32xf32>
    %c0_7 = arith.constant 0 : index
    %c0_8 = arith.constant 0 : index
    %7 = vector.load %arg3[%c0_7, %c0_8] : memref<16x128xf32, #tpu.memory_space<vmem>>, vector<16x128xf32>
    %cst = arith.constant dense<0.000000e+00> : vector<8x128xf32>
    %8 = tpu.matmul %4, %7, %cst {dimension_numbers = #tpu.dot_dimension_numbers<[1], [0], [0], [1], [0, 0, 1, 1], [], []>} : vector<8x16xf32>, vector<16x128xf32>, vector<8x128xf32> -> vector<8x128xf32>
    %c0_9 = arith.constant 0 : index
    %c0_10 = arith.constant 0 : index
    %9 = vector.load %arg4[%c0_9, %c0_10] : memref<32x128xf32, #tpu.memory_space<vmem>>, vector<32x128xf32>
    %cst_11 = arith.constant dense<0.000000e+00> : vector<8x128xf32>
    %10 = tpu.matmul %5, %9, %cst_11 {dimension_numbers = #tpu.dot_dimension_numbers<[1], [0], [0], [1], [0, 0, 1, 1], [], []>} : vector<8x32xf32>, vector<32x128xf32>, vector<8x128xf32> -> vector<8x128xf32>
    %11 = arith.addf %8, %10 : vector<8x128xf32>
    %c0_12 = arith.constant 0 : index
    %c0_13 = arith.constant 0 : index
    %12 = vector.load %arg5[%c0_12, %c0_13] : memref<1x128xf32, #tpu.memory_space<vmem>>, vector<1x128xf32>
    %13 = vector.broadcast %12 : vector<1x128xf32> to vector<8x128xf32>
    %14 = arith.addf %11, %13 : vector<8x128xf32>
    %15 = vector.extract_strided_slice %14 {offsets = [0, 0], sizes = [8, 32], strides = [1, 1]} : vector<8x128xf32> to vector<8x32xf32>
    %cst_14 = arith.constant 0.000000e+00 : f32
    %16 = vector.broadcast %cst_14 : f32 to vector<8x32xf32>
    %17 = arith.subf %16, %15 : vector<8x32xf32>
    %18 = math.exp %17 : vector<8x32xf32>
    %cst_15 = arith.constant 1.000000e+00 : f32
    %19 = vector.broadcast %cst_15 : f32 to vector<8x32xf32>
    %20 = arith.addf %19, %18 : vector<8x32xf32>
    %cst_16 = arith.constant 1.000000e+00 : f32
    %21 = vector.broadcast %cst_16 : f32 to vector<8x32xf32>
    %22 = arith.divf %21, %20 : vector<8x32xf32>
    %23 = vector.extract_strided_slice %14 {offsets = [0, 32], sizes = [8, 32], strides = [1, 1]} : vector<8x128xf32> to vector<8x32xf32>
    %cst_17 = arith.constant 0.000000e+00 : f32
    %24 = vector.broadcast %cst_17 : f32 to vector<8x32xf32>
    %25 = arith.subf %24, %23 : vector<8x32xf32>
    %26 = math.exp %25 : vector<8x32xf32>
    %cst_18 = arith.constant 1.000000e+00 : f32
    %27 = vector.broadcast %cst_18 : f32 to vector<8x32xf32>
    %28 = arith.addf %27, %26 : vector<8x32xf32>
    %cst_19 = arith.constant 1.000000e+00 : f32
    %29 = vector.broadcast %cst_19 : f32 to vector<8x32xf32>
    %30 = arith.divf %29, %28 : vector<8x32xf32>
    %31 = vector.extract_strided_slice %14 {offsets = [0, 64], sizes = [8, 32], strides = [1, 1]} : vector<8x128xf32> to vector<8x32xf32>
    %32 = math.tanh %31 : vector<8x32xf32>
    %33 = vector.extract_strided_slice %14 {offsets = [0, 96], sizes = [8, 32], strides = [1, 1]} : vector<8x128xf32> to vector<8x32xf32>
    %cst_20 = arith.constant 0.000000e+00 : f32
    %34 = vector.broadcast %cst_20 : f32 to vector<8x32xf32>
    %35 = arith.subf %34, %33 : vector<8x32xf32>
    %36 = math.exp %35 : vector<8x32xf32>
    %cst_21 = arith.constant 1.000000e+00 : f32
    %37 = vector.broadcast %cst_21 : f32 to vector<8x32xf32>
    %38 = arith.addf %37, %36 : vector<8x32xf32>
    %cst_22 = arith.constant 1.000000e+00 : f32
    %39 = vector.broadcast %cst_22 : f32 to vector<8x32xf32>
    %40 = arith.divf %39, %38 : vector<8x32xf32>
    %41 = arith.mulf %30, %6 : vector<8x32xf32>
    %42 = arith.mulf %22, %32 : vector<8x32xf32>
    %43 = arith.addf %41, %42 : vector<8x32xf32>
    %44 = math.tanh %43 : vector<8x32xf32>
    %45 = arith.mulf %40, %44 : vector<8x32xf32>
    %c0_23 = arith.constant 0 : index
    %c0_24 = arith.constant 0 : index
    %46 = vector.load %arg9[%c0_23, %c0_24] : memref<8x32xf32, #tpu.memory_space<vmem>>, vector<8x32xf32>
    tpu.vector_store %arg9[%c0_23, %c0_24], %45 {strides = array<i32>} : memref<8x32xf32, #tpu.memory_space<vmem>>, vector<8x32xf32>,
    %c0_25 = arith.constant 0 : index
    %c0_26 = arith.constant 0 : index
    %47 = vector.load %arg10[%c0_25, %c0_26] : memref<8x32xf32, #tpu.memory_space<vmem>>, vector<8x32xf32>
    tpu.vector_store %arg10[%c0_25, %c0_26], %43 {strides = array<i32>} : memref<8x32xf32, #tpu.memory_space<vmem>>, vector<8x32xf32>,
    %c7_i32 = arith.constant 7 : i32
    %48 = arith.cmpi eq, %arg1, %c7_i32 : i32
    %49 = arith.extui %48 : i1 to i32
    %c0_i32_27 = arith.constant 0 : i32
    %50 = arith.cmpi ne, %49, %c0_i32_27 : i32
    scf.if %50 {
      %c0_28 = arith.constant 0 : index
      %c0_29 = arith.constant 0 : index
      %51 = vector.load %arg6[%c0_28, %c0_29] : memref<32x16xf32, #tpu.memory_space<vmem>>, vector<32x16xf32>
      %cst_30 = arith.constant dense<0.000000e+00> : vector<8x16xf32>
      %52 = tpu.matmul %45, %51, %cst_30 {dimension_numbers = #tpu.dot_dimension_numbers<[1], [0], [0], [1], [0, 0, 1, 1], [], []>} : vector<8x32xf32>, vector<32x16xf32>, vector<8x16xf32> -> vector<8x16xf32>
      %c0_31 = arith.constant 0 : index
      %c0_32 = arith.constant 0 : index
      %53 = vector.load %arg7[%c0_31, %c0_32] : memref<1x16xf32, #tpu.memory_space<vmem>>, vector<1x16xf32>
      %54 = vector.broadcast %53 : vector<1x16xf32> to vector<8x16xf32>
      %55 = arith.addf %52, %54 : vector<8x16xf32>
      %cst_33 = arith.constant 0.000000e+00 : f32
      %56 = vector.broadcast %cst_33 : f32 to vector<8x16xf32>
      %57 = arith.maximumf %55, %56 : vector<8x16xf32>
      %c0_34 = arith.constant 0 : index
      %c0_35 = arith.constant 0 : index
      %58 = vector.load %arg8[%c0_34, %c0_35] : memref<8x16xf32, #tpu.memory_space<vmem>>, vector<8x16xf32>
      tpu.vector_store %arg8[%c0_34, %c0_35], %57 {strides = array<i32>} : memref<8x16xf32, #tpu.memory_space<vmem>>, vector<8x16xf32>,
    } else {
    }
    return
  }
  func.func @transform_0(%arg0: i32, %arg1: i32) -> (i32, i32, i32) {
    %c0_i32 = arith.constant 0 : i32
    %c0_i32_0 = arith.constant 0 : i32
    return %arg1, %arg0, %c0_i32 : i32, i32, i32
  }
  func.func @transform_1(%arg0: i32, %arg1: i32) -> (i32, i32) {
    %c0_i32 = arith.constant 0 : i32
    %c0_i32_0 = arith.constant 0 : i32
    %c0_i32_1 = arith.constant 0 : i32
    return %c0_i32, %c0_i32_0 : i32, i32
  }
  func.func @transform_2(%arg0: i32, %arg1: i32) -> (i32, i32) {
    %c0_i32 = arith.constant 0 : i32
    %c0_i32_0 = arith.constant 0 : i32
    %c0_i32_1 = arith.constant 0 : i32
    return %c0_i32, %c0_i32_0 : i32, i32
  }
  func.func @transform_3(%arg0: i32, %arg1: i32) -> (i32, i32) {
    %c0_i32 = arith.constant 0 : i32
    %c0_i32_0 = arith.constant 0 : i32
    %c0_i32_1 = arith.constant 0 : i32
    return %c0_i32, %c0_i32_0 : i32, i32
  }
  func.func @transform_4(%arg0: i32, %arg1: i32) -> (i32, i32) {
    %c0_i32 = arith.constant 0 : i32
    %c0_i32_0 = arith.constant 0 : i32
    %c0_i32_1 = arith.constant 0 : i32
    return %c0_i32, %c0_i32_0 : i32, i32
  }
  func.func @transform_5(%arg0: i32, %arg1: i32) -> (i32, i32) {
    %c0_i32 = arith.constant 0 : i32
    %c0_i32_0 = arith.constant 0 : i32
    %c0_i32_1 = arith.constant 0 : i32
    return %c0_i32, %c0_i32_0 : i32, i32
  }
  func.func @transform_6(%arg0: i32, %arg1: i32) -> (i32, i32) {
    %c0_i32 = arith.constant 0 : i32
    %c0_i32_0 = arith.constant 0 : i32
    return %arg0, %c0_i32 : i32, i32
  }
}

</mosaic_0001>

<llo_original>
// kernel: tpu_custom_call.1
$region0: #{tpu_custom_call.1}
  #allocation0 [shape = 'u32[]', space=smem, size = 0x4, offset = 0x4, fixed_abs, tag = 'smem constant byte address 0x4 - core index']
  #allocation1 [shape = 'u32[144,128]{1,0:T(1,128)}', space=vmem, size = 0x12000, scoped, tag = 'internal scratch']
  #allocation2 [shape = 'f32[8,32]{1,0:T(8,128)}', space=vmem, size = 0x1000, scoped, tag = 'scratch operand']
  #allocation3 [shape = 'f32[8,32]{1,0:T(8,128)}', space=vmem, size = 0x1000, scoped, tag = 'scratch operand']
  %s0 = inlined_call_operand.hbm [shape: f32[8,8,16], index: 0, kind: input, shape index: {}]
  %s1 = inlined_call_operand.vmem [shape: f32[16,128], index: 1, kind: input, shape index: {}]
  %s2 = inlined_call_operand.vmem [shape: f32[32,128], index: 2, kind: input, shape index: {}]
  %s3 = inlined_call_operand.vmem [shape: f32[1,128], index: 3, kind: input, shape index: {}]
  %s4 = inlined_call_operand.vmem [shape: f32[32,16], index: 4, kind: input, shape index: {}]
  %s5 = inlined_call_operand.vmem [shape: f32[1,16], index: 5, kind: input, shape index: {}]
  %s6 = inlined_call_operand.hbm [shape: f32[8,16], index: 6, kind: output, shape index: {}]
  %s7 = sld [smem:[#allocation0]]
  $region69: #{tpu_custom_call.1} parent=0
    _
  %s9 = ssub.s32 1, %s7
  %s10 = scalar_select 0, %s9, %s7
  $region1: #{tpu_custom_call.1} parent=0
    #allocation4 [shape = 'u8[8192]{0}', space=vmem, size = 0x2000, scoped, tag = 'input window, operand 0']
    #allocation5 [shape = 's32[2]{0}', space=sflag, size = 0x8, scoped, tag = 'scoped memory for tpu_custom_call.1']
    #allocation6 [shape = 's32[2]{0}', space=sflag, size = 0x8, scoped, tag = 'scoped memory for tpu_custom_call.1']
    #allocation7 [shape = 'u8[4096]{0}', space=vmem, size = 0x1000, scoped, tag = 'output window, operand 0, single buffered']
    %11 = vsyncpa [#allocation5], 0
    %s12 = scalar_lea.sflag [#allocation5], 1
    %13 = vsyncpa %s12, 0
    %14 = vsyncpa [#allocation6], 0
    loop: start=0, step=1, limit=10
    $region2: #{tpu_custom_call.1} parent=1 // loop_pre_header
      _
    $region3: #{tpu_custom_call.1} parent=1 // loop_header
      %s16 = sphi 0, %s20
      %p17 = scmp.ge.s32.totalorder %s16, 10
      %s23 = sphi 0, %s35
      %s24 = sphi 0, %s31
      %s25 = sphi 0, %s23
      %s26 = sphi 0, %s24
      %s27 = sphi 0, %s25
      %s28 = sphi 0, %s26
      %s40 = sphi 0, %s42
      %s43 = sphi 0, %s40
      %s44 = sphi 0, %s43
      %s60 = sphi 0, %s44
      %s64 = sphi 0, %s64
      %s66 = sphi 0, %s64
      %s67 = sphi 0, %s66
      %s81 = sphi 0, %s67
      %s85 = sphi 0, %s85
      %s87 = sphi 0, %s85
      %s88 = sphi 0, %s87
      %s102 = sphi 0, %s88
      %s106 = sphi 0, %s106
      %s108 = sphi 0, %s106
      %s109 = sphi 0, %s108
      %s123 = sphi 0, %s109
      %s127 = sphi 0, %s127
      %s129 = sphi 0, %s127
      %s130 = sphi 0, %s129
      %s144 = sphi 0, %s130
      %s148 = sphi 0, %s148
      %s150 = sphi 0, %s148
      %s151 = sphi 0, %s150
      %s165 = sphi 0, %s151
      %s171 = sphi 0, %s173
      %s174 = sphi 0, %s171
      %s175 = sphi 0, %s174
      %s191 = sphi 0, %s175
    $region4: #{tpu_custom_call.1} parent=1 // loop_header_branch
      %19 = sbr.rel (%p17) target = $region8
    $region5: #{tpu_custom_call.1} parent=1 // loop_body
      %s21 = ssub.s32 %s16, 1
      %s22 = ssub.s32 %s16, 2
      %s29 = sadd.s32 1, %s24
      %p30 = scmp.ge.s32.totalorder %s29, 8
      %s31 = scalar_select %p30, 0, %s29
      %s32 = sadd.s32 1, %s23
      %s33 = scalar_select %p30, %s32, %s23
      %p34 = scmp.ge.s32.totalorder %s33, 1
      %s35 = scalar_select %p34, 0, %s33
      %s36 = ssub.s32 %s24, %s31
      %s37 = ssub.s32 %s23, %s35
      %s38 = sor.u32 %s36, %s37
      %p39 = scmp.eq.s32.totalorder %s38, 0
      %s41 = sadd.s32 %s40, 1
      %s42 = scalar_select %p39, %s40, %s41
      %p45 = pneg %p39
      %p46 = scmp.eq.s32.totalorder %s16, 7
      %p47 = por %p45, %p46
      %p48 = scmp.ne.s32.totalorder %s40, %s43
      %p49 = scmp.eq.s32.totalorder %s16, 0
      %p50 = por %p48, %p49
      %p51 = scmp.ne.s32.totalorder %s40, %s43
      %p52 = scmp.eq.s32.totalorder %s21, 7
      %p53 = por %p51, %p52
      %p54 = scmp.ne.s32.totalorder %s43, %s44
      %p55 = scmp.eq.s32.totalorder %s21, 0
      %p56 = por %p54, %p55
      %p57 = scmp.ne.s32.totalorder %s43, %s44
      %p58 = scmp.eq.s32.totalorder %s22, 7
      %p59 = por %p57, %p58
      %p61 = scmp.ne.s32.totalorder %s44, %s60
      %p62 = scmp.eq.s32.totalorder %s22, 0
      %p63 = por %p61, %p62
      %s65 = sadd.s32 %s64, 1
      %p68 = scmp.eq.s32.totalorder %s16, 7
      %p69 = scmp.ne.s32.totalorder %s64, %s66
      %p70 = scmp.eq.s32.totalorder %s16, 0
      %p71 = por %p69, %p70
      %p72 = scmp.ne.s32.totalorder %s64, %s66
      %p73 = scmp.eq.s32.totalorder %s21, 7
      %p74 = por %p72, %p73
      %p75 = scmp.ne.s32.totalorder %s66, %s67
      %p76 = scmp.eq.s32.totalorder %s21, 0
      %p77 = por %p75, %p76
      %p78 = scmp.ne.s32.totalorder %s66, %s67
      %p79 = scmp.eq.s32.totalorder %s22, 7
      %p80 = por %p78, %p79
      %p82 = scmp.ne.s32.totalorder %s67, %s81
      %p83 = scmp.eq.s32.totalorder %s22, 0
      %p84 = por %p82, %p83
      %s86 = sadd.s32 %s85, 1
      %p89 = scmp.eq.s32.totalorder %s16, 7
      %p90 = scmp.ne.s32.totalorder %s85, %s87
      %p91 = scmp.eq.s32.totalorder %s16, 0
      %p92 = por %p90, %p91
      %p93 = scmp.ne.s32.totalorder %s85, %s87
      %p94 = scmp.eq.s32.totalorder %s21, 7
      %p95 = por %p93, %p94
      %p96 = scmp.ne.s32.totalorder %s87, %s88
      %p97 = scmp.eq.s32.totalorder %s21, 0
      %p98 = por %p96, %p97
      %p99 = scmp.ne.s32.totalorder %s87, %s88
      %p100 = scmp.eq.s32.totalorder %s22, 7
      %p101 = por %p99, %p100
      %p103 = scmp.ne.s32.totalorder %s88, %s102
      %p104 = scmp.eq.s32.totalorder %s22, 0
      %p105 = por %p103, %p104
      %s107 = sadd.s32 %s106, 1
      %p110 = scmp.eq.s32.totalorder %s16, 7
      %p111 = scmp.ne.s32.totalorder %s106, %s108
      %p112 = scmp.eq.s32.totalorder %s16, 0
      %p113 = por %p111, %p112
      %p114 = scmp.ne.s32.totalorder %s106, %s108
      %p115 = scmp.eq.s32.totalorder %s21, 7
      %p116 = por %p114, %p115
      %p117 = scmp.ne.s32.totalorder %s108, %s109
      %p118 = scmp.eq.s32.totalorder %s21, 0
      %p119 = por %p117, %p118
      %p120 = scmp.ne.s32.totalorder %s108, %s109
      %p121 = scmp.eq.s32.totalorder %s22, 7
      %p122 = por %p120, %p121
      %p124 = scmp.ne.s32.totalorder %s109, %s123
      %p125 = scmp.eq.s32.totalorder %s22, 0
      %p126 = por %p124, %p125
      %s128 = sadd.s32 %s127, 1
      %p131 = scmp.eq.s32.totalorder %s16, 7
      %p132 = scmp.ne.s32.totalorder %s127, %s129
      %p133 = scmp.eq.s32.totalorder %s16, 0
      %p134 = por %p132, %p133
      %p135 = scmp.ne.s32.totalorder %s127, %s129
      %p136 = scmp.eq.s32.totalorder %s21, 7
      %p137 = por %p135, %p136
      %p138 = scmp.ne.s32.totalorder %s129, %s130
      %p139 = scmp.eq.s32.totalorder %s21, 0
      %p140 = por %p138, %p139
      %p141 = scmp.ne.s32.totalorder %s129, %s130
      %p142 = scmp.eq.s32.totalorder %s22, 7
      %p143 = por %p141, %p142
      %p145 = scmp.ne.s32.totalorder %s130, %s144
      %p146 = scmp.eq.s32.totalorder %s22, 0
      %p147 = por %p145, %p146
      %s149 = sadd.s32 %s148, 1
      %p152 = scmp.eq.s32.totalorder %s16, 7
      %p153 = scmp.ne.s32.totalorder %s148, %s150
      %p154 = scmp.eq.s32.totalorder %s16, 0
      %p155 = por %p153, %p154
      %p156 = scmp.ne.s32.totalorder %s148, %s150
      %p157 = scmp.eq.s32.totalorder %s21, 7
      %p158 = por %p156, %p157
      %p159 = scmp.ne.s32.totalorder %s150, %s151
      %p160 = scmp.eq.s32.totalorder %s21, 0
      %p161 = por %p159, %p160
      %p162 = scmp.ne.s32.totalorder %s150, %s151
      %p163 = scmp.eq.s32.totalorder %s22, 7
      %p164 = por %p162, %p163
      %p166 = scmp.ne.s32.totalorder %s151, %s165
      %p167 = scmp.eq.s32.totalorder %s22, 0
      %p168 = por %p166, %p167
      %s169 = ssub.s32 %s23, %s35
      %p170 = scmp.eq.s32.totalorder %s169, 0
      %s172 = sadd.s32 %s171, 1
      %s173 = scalar_select %p170, %s171, %s172
      %p176 = pneg %p170
      %p177 = scmp.eq.s32.totalorder %s16, 7
      %p178 = por %p176, %p177
      %p179 = scmp.ne.s32.totalorder %s171, %s174
      %p180 = scmp.eq.s32.totalorder %s16, 0
      %p181 = por %p179, %p180
      %p182 = scmp.ne.s32.totalorder %s171, %s174
      %p183 = scmp.eq.s32.totalorder %s21, 7
      %p184 = por %p182, %p183
      %p185 = scmp.ne.s32.totalorder %s174, %s175
      %p186 = scmp.eq.s32.totalorder %s21, 0
      %p187 = por %p185, %p186
      %p188 = scmp.ne.s32.totalorder %s174, %s175
      %p189 = scmp.eq.s32.totalorder %s22, 7
      %p190 = por %p188, %p189
      %p192 = scmp.ne.s32.totalorder %s175, %s191
      %p193 = scmp.eq.s32.totalorder %s22, 0
      %p194 = por %p192, %p193
      %p195 = scmp.le.s32.totalorder 1, %s16
      %p196 = scmp.lt.s32.totalorder %s16, 9
      %p197 = pnand %p195, %p196
      %p198 = pneg %p197
      // Predicated region
      $region9: #{tpu_custom_call.1} parent=5 // pred_check
        _
      $region10: #{tpu_custom_call.1} parent=5 // pred_check_branch
        %200 = sbr.rel (%p197) target = $region12
      $region11: #{tpu_custom_call.1} parent=5 // pred_region
        %s201 = ssub.s32 %s16, 1
        // Predicated region
        $region13: #{tpu_custom_call.1} parent=11 // pred_check
          %p202 = pneg %p77
        $region14: #{tpu_custom_call.1} parent=11 // pred_check_branch
          %204 = sbr.rel (%p202) target = $region16
        $region15: #{tpu_custom_call.1} parent=11 // pred_region
          _
        $region16: #{tpu_custom_call.1} parent=11 // pred_fallthru
          _
        // Predicated region
        $region17: #{tpu_custom_call.1} parent=11 // pred_check
          %p205 = pneg %p98
        $region18: #{tpu_custom_call.1} parent=11 // pred_check_branch
          %207 = sbr.rel (%p205) target = $region20
        $region19: #{tpu_custom_call.1} parent=11 // pred_region
          _
        $region20: #{tpu_custom_call.1} parent=11 // pred_fallthru
          _
        // Predicated region
        $region21: #{tpu_custom_call.1} parent=11 // pred_check
          %p208 = pneg %p119
        $region22: #{tpu_custom_call.1} parent=11 // pred_check_branch
          %210 = sbr.rel (%p208) target = $region24
        $region23: #{tpu_custom_call.1} parent=11 // pred_region
          _
        $region24: #{tpu_custom_call.1} parent=11 // pred_fallthru
          _
        // Predicated region
        $region25: #{tpu_custom_call.1} parent=11 // pred_check
          %p211 = pneg %p140
        $region26: #{tpu_custom_call.1} parent=11 // pred_check_branch
          %213 = sbr.rel (%p211) target = $region28
        $region27: #{tpu_custom_call.1} parent=11 // pred_region
          _
        $region28: #{tpu_custom_call.1} parent=11 // pred_fallthru
          _
        // Predicated region
        $region29: #{tpu_custom_call.1} parent=11 // pred_check
          %p214 = pneg %p161
        $region30: #{tpu_custom_call.1} parent=11 // pred_check_branch
          %216 = sbr.rel (%p214) target = $region32
        $region31: #{tpu_custom_call.1} parent=11 // pred_region
          _
        $region32: #{tpu_custom_call.1} parent=11 // pred_fallthru
          _
      $region12: #{tpu_custom_call.1} parent=5 // pred_fallthru
        _
      %p217 = scmp.lt.s32.totalorder %s16, 8
      // Predicated region
      $region33: #{tpu_custom_call.1} parent=5 // pred_check
        %p218 = pneg %p217
      $region34: #{tpu_custom_call.1} parent=5 // pred_check_branch
        %220 = sbr.rel (%p218) target = $region36
      $region35: #{tpu_custom_call.1} parent=5 // pred_region
        // Predicated region
        $region37: #{tpu_custom_call.1} parent=35 // pred_check
          %p221 = pneg %p50
        $region38: #{tpu_custom_call.1} parent=35 // pred_check_branch
          %223 = sbr.rel (%p221) target = $region40
        $region39: #{tpu_custom_call.1} parent=35 // pred_region
          %s224 = sand.u32 %s40, 1
          %s225 = scalar_lea.sflag [#allocation5], %s224
          %s226 = sand.u32 %s40, 1
          %s227 = smul.addr %s226, 8
          %s228 = scalar_lea.vmem [#allocation4], %s227
          %s230 = ssub.s32 128, 128
          %231 = vsyncadd %s225, %s230
          %s232 = sadd.s32 %s23, %s24
          %s233 = smul.addr %s232, 128
          %s234 = scalar_lea.hbm %s0, %s233
          %s236 = sshll.u32 %s228, 4
          %s237 = int_to_ptr.vmem [resolvable:$true] %s236
          %239 = dma.hbm_to_vmem [thread:$0]  %s234, 128, %s237, %s225
        $region40: #{tpu_custom_call.1} parent=35 // pred_fallthru
          _
      $region36: #{tpu_custom_call.1} parent=5 // pred_fallthru
        _
      %p240 = scmp.le.s32.totalorder 1, %s16
      %p241 = scmp.lt.s32.totalorder %s16, 9
      %p242 = pnand %p240, %p241
      %p243 = pneg %p242
      // Predicated region
      $region41: #{tpu_custom_call.1} parent=5 // pred_check
        _
      $region42: #{tpu_custom_call.1} parent=5 // pred_check_branch
        %245 = sbr.rel (%p242) target = $region44
      $region43: #{tpu_custom_call.1} parent=5 // pred_region
        %s246 = ssub.s32 %s16, 1
        %s247 = sand.u32 %s43, 1
        %s248 = scalar_lea.sflag [#allocation5], %s247
        %s249 = sand.u32 %s43, 1
        %s250 = smul.addr %s249, 8
        %s251 = scalar_lea.vmem [#allocation4], %s250
        // Predicated region
        $region45: #{tpu_custom_call.1} parent=43 // pred_check
          %p252 = pneg %p56
        $region46: #{tpu_custom_call.1} parent=43 // pred_check_branch
          %254 = sbr.rel (%p252) target = $region48
        $region47: #{tpu_custom_call.1} parent=43 // pred_region
          %255 = dma.done %s248, 128
        $region48: #{tpu_custom_call.1} parent=43 // pred_fallthru
          _
        %s256 = sand.u32 %s43, 1
        %s257 = scalar_lea.sflag [#allocation5], %s256
        %s258 = sand.u32 %s43, 1
        %s259 = smul.addr %s258, 8
        %s260 = scalar_lea.vmem [#allocation4], %s259
        %p261 = pneg %p56
        %p262 = pneg %p53
        %p263 = pneg %p77
        %p264 = pneg %p74
        %p265 = pneg %p98
        %p266 = pneg %p95
        %p267 = pneg %p119
        %p268 = pneg %p116
        %p269 = pneg %p140
        %p270 = pneg %p137
        %p271 = pneg %p161
        %p272 = pneg %p158
        %p273 = pneg %p187
        %p274 = pneg %p184
        %p275 = scmp.eq.s32.totalorder %s26, 0
        // Predicated region
        $region49: #{tpu_custom_call.1} parent=43 // pred_check
          %p276 = pneg %p275
        $region50: #{tpu_custom_call.1} parent=43 // pred_check_branch
          %278 = sbr.rel (%p276) target = $region52
        $region51: #{tpu_custom_call.1} parent=43 // pred_region
          %vm279 = vcmask 261120
          %280 = vst.msk [vmem:[#allocation2] sm:$0xff] %vm279, 0.0
          %281 = vst.msk [vmem:[#allocation3] sm:$0xff] %vm279, 0.0
        $region52: #{tpu_custom_call.1} parent=43 // pred_fallthru
          _
        %v282 = vld [vmem:[%s251] sm:$0xff]
        %v283 = vld [vmem:[#allocation2] sm:$0xff]
        %v284 = vld [vmem:[#allocation3] sm:$0xff]
        %v285 = vld [vmem:[%s1] sm:$0xff]
        %v286 = vld [vmem:[%s1 + $0x8] sm:$0xff]
        %v287 = vld [vmem:[%s2] sm:$0xff]
        %v288 = vld [vmem:[%s2 + $0x8] sm:$0xff]
        %v289 = vld [vmem:[%s2 + $0x10] sm:$0xff]
        %v290 = vld [vmem:[%s2 + $0x18] sm:$0xff]
        %vm291 = vcmask 261120
        %v293 = vsel %vm291, %v283, 0
        %295 = vmatprep.subr.mxu0 0.0
        %296 = vmatpush1.msra.mxu0 %v287
        %297 = vmatprep.subr.mxu0 0.0
        %298 = vmatpush1.msra.mxu0 %v288
        %299 = vmatprep.subr.mxu0 0.0
        %300 = vmatpush1.msra.mxu0 %v289
        %301 = vmatprep.subr.mxu0 0.0
        %302 = vmatpush1.msra.mxu0 %v290
        %303 = vmatprep.subr.mxu0 0.0
        %304 = vmatpush1.msra.mxu0 0.0
        %305 = vmatprep.subr.mxu0 0.0
        %306 = vmatpush1.msra.mxu0 0.0
        %307 = vmatprep.subr.mxu0 0.0
        %308 = vmatpush1.msra.mxu0 0.0
        %309 = vmatprep.subr.mxu0 0.0
        %310 = vmatpush1.msra.mxu0 0.0
        %311 = vmatprep.subr.mxu0 0.0
        %312 = vmatpush1.msra.mxu0 0.0
        %313 = vmatprep.subr.mxu0 0.0
        %314 = vmatpush1.msra.mxu0 0.0
        %315 = vmatprep.subr.mxu0 0.0
        %316 = vmatpush1.msra.mxu0 0.0
        %317 = vmatprep.subr.mxu0 0.0
        %318 = vmatpush1.msra.mxu0 0.0
        %319 = vmatprep.subr.mxu0 0.0
        %320 = vmatpush1.msra.mxu0 0.0
        %321 = vmatprep.subr.mxu0 0.0
        %322 = vmatpush1.msra.mxu0 0.0
        %323 = vmatprep.subr.mxu0 0.0
        %324 = vmatpush1.msra.mxu0 0.0
        %325 = vmatprep.subr.mxu0 0.0
        %326 = vmatpush1.msra.mxu0 0.0
        %327 = vmatprep.subr.mxu0 0.0
        %328 = vmatpush1.msra.mxu0 0.0
        %329 = vmatprep.subr.mxu0 0.0
        %330 = vmatpush1.msra.mxu0 0.0
        %331 = vmatprep.subr.mxu0 0.0
        %332 = vmatpush1.msra.mxu0 0.0
        %333 = vmatprep.subr.mxu0 0.0
        %334 = vmatpush1.msra.mxu0 0.0
        %335 = vmatprep.subr.mxu0 0.0
        %336 = vmatpush1.msra.mxu0 0.0
        %337 = vmatprep.subr.mxu0 0.0
        %338 = vmatpush1.msra.mxu0 0.0
        %339 = vmatprep.subr.mxu0 0.0
        %340 = vmatpush1.msra.mxu0 0.0
        %341 = vmatprep.subr.mxu0 0.0
        %342 = vmatpush1.msra.mxu0 0.0
        %343 = vmatprep.subr.mxu0 0.0
        %344 = vmatpush1.msra.mxu0 0.0
        %345 = vmatprep.subr.mxu0 0.0
        %346 = vmatpush1.msra.mxu0 0.0
        %347 = vmatprep.subr.mxu0 0.0
        %348 = vmatpush1.msra.mxu0 0.0
        %349 = vmatprep.subr.mxu0 0.0
        %350 = vmatpush1.msra.mxu0 0.0
        %351 = vmatprep.subr.mxu0 0.0
        %352 = vmatpush1.msra.mxu0 0.0
        %353 = vmatprep.subr.mxu0 0.0
        %354 = vmatpush1.msra.mxu0 0.0
        %355 = vmatprep.subr.mxu0 0.0
        %356 = vmatpush1.msra.mxu0 0.0
        %357 = vmatprep.subr.mxu0 0.0
        %358 = vmatpush1.msra.mxu0 0.0
        %359 = vmatprep.mubr.f32.mxu0 0.0
        %360 = vmatmul.mubr.f32.gmra.mrb[0].mxu0 %v293
        %v361 = vpop.f32.mrb[0].mxu0
        %v362 = vadd.f32 0.0, %v361
        %v363 = vpop.f32.mrb[0].mxu0
        %364 = vdwg.mxu0
        %vm365 = vcmask 130048
        %v367 = vsel %vm365, %v282, 0
        %369 = vmatprep.subr.mxu0 0.0
        %370 = vmatpush1.msra.mxu0 %v285
        %371 = vmatprep.subr.mxu0 0.0
        %372 = vmatpush1.msra.mxu0 %v286
        %373 = vmatprep.subr.mxu0 0.0
        %374 = vmatpush1.msra.mxu0 0.0
        %375 = vmatprep.subr.mxu0 0.0
        %376 = vmatpush1.msra.mxu0 0.0
        %377 = vmatprep.subr.mxu0 0.0
        %378 = vmatpush1.msra.mxu0 0.0
        %379 = vmatprep.subr.mxu0 0.0
        %380 = vmatpush1.msra.mxu0 0.0
        %381 = vmatprep.subr.mxu0 0.0
        %382 = vmatpush1.msra.mxu0 0.0
        %383 = vmatprep.subr.mxu0 0.0
        %384 = vmatpush1.msra.mxu0 0.0
        %385 = vmatprep.subr.mxu0 0.0
        %386 = vmatpush1.msra.mxu0 0.0
        %387 = vmatprep.subr.mxu0 0.0
        %388 = vmatpush1.msra.mxu0 0.0
        %389 = vmatprep.subr.mxu0 0.0
        %390 = vmatpush1.msra.mxu0 0.0
        %391 = vmatprep.subr.mxu0 0.0
        %392 = vmatpush1.msra.mxu0 0.0
        %393 = vmatprep.subr.mxu0 0.0
        %394 = vmatpush1.msra.mxu0 0.0
        %395 = vmatprep.subr.mxu0 0.0
        %396 = vmatpush1.msra.mxu0 0.0
        %397 = vmatprep.subr.mxu0 0.0
        %398 = vmatpush1.msra.mxu0 0.0
        %399 = vmatprep.subr.mxu0 0.0
        %400 = vmatpush1.msra.mxu0 0.0
        %401 = vmatprep.subr.mxu0 0.0
        %402 = vmatpush1.msra.mxu0 0.0
        %403 = vmatprep.subr.mxu0 0.0
        %404 = vmatpush1.msra.mxu0 0.0
        %405 = vmatprep.subr.mxu0 0.0
        %406 = vmatpush1.msra.mxu0 0.0
        %407 = vmatprep.subr.mxu0 0.0
        %408 = vmatpush1.msra.mxu0 0.0
        %409 = vmatprep.subr.mxu0 0.0
        %410 = vmatpush1.msra.mxu0 0.0
        %411 = vmatprep.subr.mxu0 0.0
        %412 = vmatpush1.msra.mxu0 0.0
        %413 = vmatprep.subr.mxu0 0.0
        %414 = vmatpush1.msra.mxu0 0.0
        %415 = vmatprep.subr.mxu0 0.0
        %416 = vmatpush1.msra.mxu0 0.0
        %417 = vmatprep.subr.mxu0 0.0
        %418 = vmatpush1.msra.mxu0 0.0
        %419 = vmatprep.subr.mxu0 0.0
        %420 = vmatpush1.msra.mxu0 0.0
        %421 = vmatprep.subr.mxu0 0.0
        %422 = vmatpush1.msra.mxu0 0.0
        %423 = vmatprep.subr.mxu0 0.0
        %424 = vmatpush1.msra.mxu0 0.0
        %425 = vmatprep.subr.mxu0 0.0
        %426 = vmatpush1.msra.mxu0 0.0
        %427 = vmatprep.subr.mxu0 0.0
        %428 = vmatpush1.msra.mxu0 0.0
        %429 = vmatprep.subr.mxu0 0.0
        %430 = vmatpush1.msra.mxu0 0.0
        %431 = vmatprep.subr.mxu0 0.0
        %432 = vmatpush1.msra.mxu0 0.0
        %433 = vmatprep.mubr.f32.mxu0 0.0
        %434 = vmatmul.mubr.f32.gmra.mrb[0].mxu0 %v367
        %v435 = vpop.f32.mrb[0].mxu0
        %v436 = vadd.f32 %v362, %v435
        %v437 = vpop.f32.mrb[0].mxu0
        %438 = vdwg.mxu0
        %v439 = vld [vmem:[%s3] sm:$0x1]
        %v441 = vlaneseq
        %v442 = vshrl.u32 %v441, 7
        %v443 = vsub.s32 0, %v442
        %v444 = vrot.slane %v439, %v443
        %v446 = vadd.f32 %v436, %v444
        %v447 = vsub.f32 0.0, %v446
        %v448 = vmul.f32 %v447, 1.442695
        %v449 = vpow.pop %v448
        %v450 = vadd.f32 %v449, 1.0
        %v451 = vrcp.pop %v450
        %v452 = vmul.f32 1.0, %v451
        %v453 = vtanh.pop %v446
        %455 = vrot.lane.b32.xlu0 %v284, 32
        %v456 = vpop.permute.xlu0 %455
        %v458 = vmul.f32 %v452, %v456
        %460 = vrot.lane.b32.xlu0 %v453, 64
        %v461 = vpop.permute.xlu0 %460
        %v463 = vmul.f32 %v452, %v461
        %465 = vrot.lane.b32.xlu0 %v463, 32
        %v466 = vpop.permute.xlu0 %465
        %v468 = vadd.f32 %v458, %v466
        %v469 = vtanh.pop %v468
        %471 = vrot.lane.b32.xlu0 %v469, 64
        %v472 = vpop.permute.xlu0 %471
        %v474 = vmul.f32 %v452, %v472
        %476 = vrot.lane.b32.xlu0 %v474, 32
        %v477 = vpop.permute.xlu0 %476
        %479 = vst.msk [vmem:[#allocation2] sm:$0xff] %vm291, %v477
        %481 = vrot.lane.b32.xlu0 %v468, 96
        %v482 = vpop.permute.xlu0 %481
        %484 = vst.msk [vmem:[#allocation3] sm:$0xff] %vm291, %v482
        %p485 = scmp.eq.s32.totalorder %s26, 7
        // Predicated region
        $region53: #{tpu_custom_call.1} parent=43 // pred_check
          %p486 = pneg %p485
        $region54: #{tpu_custom_call.1} parent=43 // pred_check_branch
          %488 = sbr.rel (%p486) target = $region56
        $region55: #{tpu_custom_call.1} parent=43 // pred_region
          %v489 = vld [vmem:[%s4] sm:$0xff]
          %v490 = vld [vmem:[%s4 + $0x8] sm:$0xff]
          %v491 = vld [vmem:[%s4 + $0x10] sm:$0xff]
          %v492 = vld [vmem:[%s4 + $0x18] sm:$0xff]
          %v493 = vld [vmem:[%s5] sm:$0x1]
          %v495 = vlaneseq
          %v496 = vshrl.u32 %v495, 7
          %v497 = vsub.s32 0, %v496
          %v498 = vrot.slane %v493, %v497
          %v500 = vsel %vm291, %v477, 0
          %502 = vmatprep.subr.mxu0 0.0
          %503 = vmatpush1.msra.mxu0 %v489
          %504 = vmatprep.subr.mxu0 0.0
          %505 = vmatpush1.msra.mxu0 %v490
          %506 = vmatprep.subr.mxu0 0.0
          %507 = vmatpush1.msra.mxu0 %v491
          %508 = vmatprep.subr.mxu0 0.0
          %509 = vmatpush1.msra.mxu0 %v492
          %510 = vmatprep.subr.mxu0 0.0
          %511 = vmatpush1.msra.mxu0 0.0
          %512 = vmatprep.subr.mxu0 0.0
          %513 = vmatpush1.msra.mxu0 0.0
          %514 = vmatprep.subr.mxu0 0.0
          %515 = vmatpush1.msra.mxu0 0.0
          %516 = vmatprep.subr.mxu0 0.0
          %517 = vmatpush1.msra.mxu0 0.0
          %518 = vmatprep.subr.mxu0 0.0
          %519 = vmatpush1.msra.mxu0 0.0
          %520 = vmatprep.subr.mxu0 0.0
          %521 = vmatpush1.msra.mxu0 0.0
          %522 = vmatprep.subr.mxu0 0.0
          %523 = vmatpush1.msra.mxu0 0.0
          %524 = vmatprep.subr.mxu0 0.0
          %525 = vmatpush1.msra.mxu0 0.0
          %526 = vmatprep.subr.mxu0 0.0
          %527 = vmatpush1.msra.mxu0 0.0
          %528 = vmatprep.subr.mxu0 0.0
          %529 = vmatpush1.msra.mxu0 0.0
          %530 = vmatprep.subr.mxu0 0.0
          %531 = vmatpush1.msra.mxu0 0.0
          %532 = vmatprep.subr.mxu0 0.0
          %533 = vmatpush1.msra.mxu0 0.0
          %534 = vmatprep.subr.mxu0 0.0
          %535 = vmatpush1.msra.mxu0 0.0
          %536 = vmatprep.subr.mxu0 0.0
          %537 = vmatpush1.msra.mxu0 0.0
          %538 = vmatprep.subr.mxu0 0.0
          %539 = vmatpush1.msra.mxu0 0.0
          %540 = vmatprep.subr.mxu0 0.0
          %541 = vmatpush1.msra.mxu0 0.0
          %542 = vmatprep.subr.mxu0 0.0
          %543 = vmatpush1.msra.mxu0 0.0
          %544 = vmatprep.subr.mxu0 0.0
          %545 = vmatpush1.msra.mxu0 0.0
          %546 = vmatprep.subr.mxu0 0.0
          %547 = vmatpush1.msra.mxu0 0.0
          %548 = vmatprep.subr.mxu0 0.0
          %549 = vmatpush1.msra.mxu0 0.0
          %550 = vmatprep.subr.mxu0 0.0
          %551 = vmatpush1.msra.mxu0 0.0
          %552 = vmatprep.subr.mxu0 0.0
          %553 = vmatpush1.msra.mxu0 0.0
          %554 = vmatprep.subr.mxu0 0.0
          %555 = vmatpush1.msra.mxu0 0.0
          %556 = vmatprep.subr.mxu0 0.0
          %557 = vmatpush1.msra.mxu0 0.0
          %558 = vmatprep.subr.mxu0 0.0
          %559 = vmatpush1.msra.mxu0 0.0
          %560 = vmatprep.subr.mxu0 0.0
          %561 = vmatpush1.msra.mxu0 0.0
          %562 = vmatprep.subr.mxu0 0.0
          %563 = vmatpush1.msra.mxu0 0.0
          %564 = vmatprep.subr.mxu0 0.0
          %565 = vmatpush1.msra.mxu0 0.0
          %566 = vmatprep.mubr.f32.mxu0 0.0
          %567 = vmatmul.mubr.f32.gmra.mrb[0].mxu0 %v500
          %v568 = vpop.f32.mrb[0].mxu0
          %v569 = vadd.f32 %v498, %v568
          %v570 = vpop.f32.mrb[0].mxu0
          %571 = vdwg.mxu0
          %v572 = vmax.f32 %v569, 0.0
          %573 = vst.msk [vmem:[#allocation7] sm:$0xff] %vm365, %v572
        $region56: #{tpu_custom_call.1} parent=43 // pred_fallthru
          _
        // Predicated region
        $region57: #{tpu_custom_call.1} parent=43 // pred_check
          %p574 = pneg %p184
        $region58: #{tpu_custom_call.1} parent=43 // pred_check_branch
          %576 = sbr.rel (%p574) target = $region60
        $region59: #{tpu_custom_call.1} parent=43 // pred_region
          %s578 = ssub.s32 128, 128
          %579 = vsyncadd [#allocation6], %s578
          %s580 = smul.addr %s25, 128
          %s581 = scalar_lea.hbm %s6, %s580
          %s583 = sshll.u32 [#allocation7], 4
          %s584 = int_to_ptr.vmem [resolvable:$true] %s583
          %586 = dma.vmem_to_hbm [thread:$0]  %s584, 128, %s581, [#allocation6]
        $region60: #{tpu_custom_call.1} parent=43 // pred_fallthru
          _
        // Predicated region
        $region61: #{tpu_custom_call.1} parent=43 // pred_check
          %p587 = pneg %p184
        $region62: #{tpu_custom_call.1} parent=43 // pred_check_branch
          %589 = sbr.rel (%p587) target = $region64
        $region63: #{tpu_custom_call.1} parent=43 // pred_region
          %590 = dma.done [#allocation6], 128
        $region64: #{tpu_custom_call.1} parent=43 // pred_fallthru
          _
      $region44: #{tpu_custom_call.1} parent=5 // pred_fallthru
        _
      %p591 = scmp.le.s32.totalorder 2, %s16
      // Predicated region
      $region65: #{tpu_custom_call.1} parent=5 // pred_check
        %p592 = pneg %p591
      $region66: #{tpu_custom_call.1} parent=5 // pred_check_branch
        %594 = sbr.rel (%p592) target = $region68
      $region67: #{tpu_custom_call.1} parent=5 // pred_region
        %s595 = ssub.s32 %s16, 2
      $region68: #{tpu_custom_call.1} parent=5 // pred_fallthru
        _
    $region6: #{tpu_custom_call.1} parent=1 // loop_footer
      %s20 = sadd.s32 1, %s16
    $region7: #{tpu_custom_call.1} parent=1 // loop_footer_branch
      %15 = sbr.rel target = $region3
    $region8: #{tpu_custom_call.1} parent=1 // loop_exit
      _
    %596 = vsyncpa [#allocation5], 1
    %s597 = scalar_lea.sflag [#allocation5], 1
    %598 = vsyncpa %s597, 1
    %599 = vsyncpa [#allocation6], 1
    %s600 = scalar_lea.sflag [#allocation6], 1
    %601 = vsyncpa %s600, 1

</llo_original>
